<compile_context>
chip_gen: v6e
topology: v6e:2x2x1
jax: 0.10.0
libtpu: 0.0.40
codegen_flags: <defaults>
</compile_context>

<pallas_src>
import jax
import jax.numpy as jnp
from jax import lax
from jax.experimental import pallas as pl
from jax.experimental.pallas import tpu as pltpu


def _attention_pooling_kernel(x_ref, m_ref, w_ref, b_ref, o_ref):
    # x_ref: (TB, S, H)  tile of TB batch rows (full S / H extents)
    # m_ref: (TB, S)     mask, lane-dense along S
    # w_ref: (1, 1, H)   projection weight, lane-dense along H
    # b_ref: (1, 1)      projection bias (SMEM scalar)
    # o_ref: (TB, H)     pooled output tile
    b = b_ref[0, 0]

    # Linear(H -> 1): VPU multiply + lane (H) reduction.  Streams the x tile
    # straight from VMEM; no MXU stationary-weight load of the big tile.
    logits = jnp.sum(x_ref[...] * w_ref[...], axis=-1) + b        # (TB, S) f32

    # multiplicative masking, exactly as in the PyTorch module
    logits = logits * m_ref[...]

    # softmax over S (lane axis) + epsilon re-normalization
    mx = jnp.max(logits, axis=-1, keepdims=True)                  # (TB, 1)
    e = jnp.exp(logits - mx)                                      # (TB, S)
    p = e / jnp.sum(e, axis=-1, keepdims=True)
    p = p / (jnp.sum(p, axis=-1, keepdims=True) + 1e-13)          # (TB, S)

    # weighted pooling: broadcast probs over H (lanes), reduce over S
    # (sublane axis).  Second pass over the x tile from VMEM, f32 accumulate.
    atts = jnp.sum(p[:, :, None] * x_ref[...], axis=1)            # (TB, H)
    o_ref[...] = atts.astype(o_ref.dtype)


def _cdiv(a, b):
    return -(-a // b)


def _vmem_budget():
    """Return (x-block byte budget, scoped VMEM limit) sized from the chip."""
    vmem = None
    try:
        vmem = getattr(pltpu.get_tpu_info(), "vmem_capacity_bytes", None)
    except Exception:
        vmem = None
    if vmem is None:
        vmem = 64 * 1024 * 1024             # unknown chip: assume smallest VMEM (v7x)
    if vmem >= 96 * 1024 * 1024:            # v5e / v6e: 128 MiB physical VMEM
        return 24 * 1024 * 1024, 100 * 1024 * 1024
    # v7x: 64 MiB per TensorCore.  2x(x block) double-buffer plus ~1 block of
    # elementwise temporaries must stay under the scoped limit.
    return 12 * 1024 * 1024, 48 * 1024 * 1024


def _choose_tb(B, S, H, itemsize, budget_bytes):
    """Biggest batch tile within budget; 8-aligned (or == B) since the 2-D
    mask/output blocks carry TB on the sublane axis; even number of near-full
    grid steps so v7x's two TensorCores stay balanced."""
    per_row = max(1, S * H * itemsize)
    tb = int(budget_bytes // per_row)
    if tb >= B:
        return B
    if tb < 8:
        # TODO(synk): S-tiled online-softmax fallback for rows too large to fit
        # a comfortable VMEM block (very large S*H); smallest aligned tile for now.
        return min(B, 8)
    steps = _cdiv(B, tb)
    if steps % 2:
        steps += 1                          # even step count for 2-TC chips
    tb = min(_cdiv(_cdiv(B, steps), 8) * 8, B)
    return max(8, tb)


def attention_pooling(tensor, mask, weight, bias, *, x_block_budget_bytes=None):
    """tensor: (B,S,H), mask: (B,S), weight: (1,H), bias: (1,1) -> (B,H)."""
    B, S, H = tensor.shape
    out_dtype = tensor.dtype

    budget, vmem_limit = _vmem_budget()
    if x_block_budget_bytes is not None:
        budget = int(x_block_budget_bytes)
    TB = _choose_tb(B, S, H, tensor.dtype.itemsize, budget)

    # No padding / copying of the big tensor: only the tiny side inputs are
    # reshaped / cast.  (bf16 tensors also work: math promotes to f32.)
    mask2 = mask.astype(jnp.float32)                   # (B, S), S lane-dense
    w3 = weight.reshape(1, 1, H).astype(jnp.float32)   # H lane-dense
    b2 = bias.reshape(1, 1).astype(jnp.float32)        # SMEM scalar

    grid = (_cdiv(B, TB),)
    return pl.pallas_call(
        _attention_pooling_kernel,
        out_shape=jax.ShapeDtypeStruct((B, H), out_dtype),
        grid_spec=pltpu.PrefetchScalarGridSpec(
            num_scalar_prefetch=0,
            grid=grid,
            in_specs=[
                pl.BlockSpec((TB, S, H), lambda i: (i, 0, 0)),      # x tile
                pl.BlockSpec((TB, S), lambda i: (i, 0)),            # mask tile
                pl.BlockSpec((1, 1, H), lambda i: (0, 0, 0)),       # weight
                pl.BlockSpec(memory_space=pltpu.MemorySpace.SMEM),  # bias
            ],
            out_specs=pl.BlockSpec((TB, H), lambda i: (i, 0)),
        ),
        compiler_params=pltpu.CompilerParams(
            dimension_semantics=("parallel",),
            vmem_limit_bytes=vmem_limit,
        ),
    )(tensor, mask2, w3, b2)


def _reference(tensor, mask, weight, bias):
    # plain-JAX mirror of the PyTorch forward (HIGHEST precision so the f32
    # einsums match the kernel's exact-f32 VPU arithmetic).
    logits = jnp.einsum("bsh,oh->bs", tensor, weight,
                        precision=lax.Precision.HIGHEST) + bias[0, 0]
    logits = logits * mask
    sw = jax.nn.softmax(logits, axis=-1)
    sw = sw / (jnp.sum(sw, axis=-1, keepdims=True) + 1e-13)
    return jnp.einsum("bs,bsh->bh", sw, tensor,
                      precision=lax.Precision.HIGHEST)


def _run_case(key, B, S, H, x_block_budget_bytes=None):
    k_x, k_m, k_w, k_b = jax.random.split(key, 4)
    tensor = jax.random.normal(k_x, (B, S, H), dtype=jnp.float32)
    mask = (jax.random.uniform(k_m, (B, S)) > 0.3).astype(jnp.float32)
    weight = jax.random.normal(k_w, (1, H), dtype=jnp.float32) * 0.1
    bias = jax.random.normal(k_b, (1, 1), dtype=jnp.float32) * 0.1

    out = attention_pooling(tensor, mask, weight, bias,
                            x_block_budget_bytes=x_block_budget_bytes)
    out = jax.block_until_ready(out)
    ref = _reference(tensor, mask, weight, bias)
    assert out.shape == (B, H)
    assert jnp.allclose(out, ref, atol=1e-5, rtol=1e-5), "mismatch vs reference"


if __name__ == "__main__":
    key = jax.random.PRNGKey(0)
    k1, k2 = jax.random.split(key)

    # primary case: batch=2, seq=8, hidden=32 (single full block, grid=(1,))
    _run_case(k1, B=2, S=8, H=32)

    # multi-step case: tiny block budget forces TB=8 -> two full batch tiles
    # on the 'parallel' grid axis (exercises the tiled / multi-core path).
    _run_case(k2, B=16, S=8, H=128, x_block_budget_bytes=8 * 8 * 128 * 4)

    print("KERNEL_OK")
</pallas_src>

<mosaic_0001>
module attributes {stable_mosaic.version = 11 : i64} {
  func.func @_attention_pooling_kernel(%arg0: i32, %arg1: memref<2x8x32xf32, #tpu.memory_space<vmem>>, %arg2: memref<2x8xf32, #tpu.memory_space<vmem>>, %arg3: memref<1x1x32xf32, #tpu.memory_space<vmem>>, %arg4: memref<1x1xf32, #tpu.memory_space<smem>>, %arg5: memref<2x32xf32, #tpu.memory_space<vmem>>) attributes {dimension_semantics = [#tpu.dimension_semantics<parallel>], iteration_bounds = array<i64: 1>, scalar_prefetch = 0 : i64, scratch_operands = 0 : i64, tpu.core_type = #tpu.core_type<tc>, window_params = [{transform_indices = @transform_0, window_bounds = array<i64: 2, 8, 32>}, {transform_indices = @transform_1, window_bounds = array<i64: 2, 8>}, {pipeline_mode = #tpu.pipeline_mode<synchronous>, transform_indices = @transform_2, window_bounds = array<i64: 1, 1, 32>}, {transform_indices = @transform_3, window_bounds = array<i64: 1, 1>}, {transform_indices = @transform_4, window_bounds = array<i64: 2, 32>}]} {
    %c0 = arith.constant 0 : index
    %c0_0 = arith.constant 0 : index
    %0 = memref.load %arg4[%c0, %c0_0] : memref<1x1xf32, #tpu.memory_space<smem>>
    %c0_1 = arith.constant 0 : index
    %c0_2 = arith.constant 0 : index
    %c0_3 = arith.constant 0 : index
    %1 = vector.load %arg1[%c0_1, %c0_2, %c0_3] : memref<2x8x32xf32, #tpu.memory_space<vmem>>, vector<2x8x32xf32>
    %c0_4 = arith.constant 0 : index
    %c0_5 = arith.constant 0 : index
    %c0_6 = arith.constant 0 : index
    %2 = vector.load %arg3[%c0_4, %c0_5, %c0_6] : memref<1x1x32xf32, #tpu.memory_space<vmem>>, vector<1x1x32xf32>
    %3 = vector.broadcast %2 : vector<1x1x32xf32> to vector<2x8x32xf32>
    %4 = arith.mulf %1, %3 : vector<2x8x32xf32>
    %cst = arith.constant dense<0.000000e+00> : vector<2x8xf32>
    %5 = vector.multi_reduction <add>, %4, %cst [2] : vector<2x8x32xf32> to vector<2x8xf32>
    %6 = vector.broadcast %0 : f32 to vector<2x8xf32>
    %7 = arith.addf %5, %6 : vector<2x8xf32>
    %c0_7 = arith.constant 0 : index
    %c0_8 = arith.constant 0 : index
    %8 = vector.load %arg2[%c0_7, %c0_8] : memref<2x8xf32, #tpu.memory_space<vmem>>, vector<2x8xf32>
    %9 = arith.mulf %7, %8 : vector<2x8xf32>
    %cst_9 = arith.constant dense<0xFF800000> : vector<2xf32>
    %10 = vector.multi_reduction <maximumf>, %9, %cst_9 [1] : vector<2x8xf32> to vector<2xf32>
    %11 = vector.shape_cast %10 : vector<2xf32> to vector<2x1xf32>
    %12 = vector.broadcast %11 : vector<2x1xf32> to vector<2x8xf32>
    %13 = arith.subf %9, %12 : vector<2x8xf32>
    %14 = math.exp %13 : vector<2x8xf32>
    %cst_10 = arith.constant dense<0.000000e+00> : vector<2xf32>
    %15 = vector.multi_reduction <add>, %14, %cst_10 [1] : vector<2x8xf32> to vector<2xf32>
    %16 = vector.shape_cast %15 : vector<2xf32> to vector<2x1xf32>
    %17 = vector.broadcast %16 : vector<2x1xf32> to vector<2x8xf32>
    %18 = arith.divf %14, %17 : vector<2x8xf32>
    %cst_11 = arith.constant dense<0.000000e+00> : vector<2xf32>
    %19 = vector.multi_reduction <add>, %18, %cst_11 [1] : vector<2x8xf32> to vector<2xf32>
    %20 = vector.shape_cast %19 : vector<2xf32> to vector<2x1xf32>
    %cst_12 = arith.constant 9.99999982E-14 : f32
    %21 = vector.broadcast %cst_12 : f32 to vector<2x1xf32>
    %22 = arith.addf %20, %21 : vector<2x1xf32>
    %23 = vector.broadcast %22 : vector<2x1xf32> to vector<2x8xf32>
    %24 = arith.divf %18, %23 : vector<2x8xf32>
    %25 = vector.shape_cast %24 : vector<2x8xf32> to vector<2x8x1xf32>
    %c0_13 = arith.constant 0 : index
    %c0_14 = arith.constant 0 : index
    %c0_15 = arith.constant 0 : index
    %26 = vector.load %arg1[%c0_13, %c0_14, %c0_15] : memref<2x8x32xf32, #tpu.memory_space<vmem>>, vector<2x8x32xf32>
    %27 = vector.broadcast %25 : vector<2x8x1xf32> to vector<2x8x32xf32>
    %28 = arith.mulf %27, %26 : vector<2x8x32xf32>
    %cst_16 = arith.constant dense<0.000000e+00> : vector<2x32xf32>
    %29 = vector.multi_reduction <add>, %28, %cst_16 [1] : vector<2x8x32xf32> to vector<2x32xf32>
    %c0_17 = arith.constant 0 : index
    %c0_18 = arith.constant 0 : index
    %30 = vector.load %arg5[%c0_17, %c0_18] : memref<2x32xf32, #tpu.memory_space<vmem>>, vector<2x32xf32>
    tpu.vector_store %arg5[%c0_17, %c0_18], %29 {strides = array<i32>} : memref<2x32xf32, #tpu.memory_space<vmem>>, vector<2x32xf32>,
    return
  }
  func.func @transform_0(%arg0: i32) -> (i32, i32, i32) {
    %c0_i32 = arith.constant 0 : i32
    %c0_i32_0 = arith.constant 0 : i32
    %c0_i32_1 = arith.constant 0 : i32
    return %arg0, %c0_i32, %c0_i32_0 : i32, i32, i32
  }
  func.func @transform_1(%arg0: i32) -> (i32, i32) {
    %c0_i32 = arith.constant 0 : i32
    %c0_i32_0 = arith.constant 0 : i32
    return %arg0, %c0_i32 : i32, i32
  }
  func.func @transform_2(%arg0: i32) -> (i32, i32, i32) {
    %c0_i32 = arith.constant 0 : i32
    %c0_i32_0 = arith.constant 0 : i32
    %c0_i32_1 = arith.constant 0 : i32
    %c0_i32_2 = arith.constant 0 : i32
    return %c0_i32, %c0_i32_0, %c0_i32_1 : i32, i32, i32
  }
  func.func @transform_3(%arg0: i32) -> (i32, i32) {
    %c0_i32 = arith.constant 0 : i32
    %c0_i32_0 = arith.constant 0 : i32
    %c0_i32_1 = arith.constant 0 : i32
    return %c0_i32, %c0_i32_0 : i32, i32
  }
  func.func @transform_4(%arg0: i32) -> (i32, i32) {
    %c0_i32 = arith.constant 0 : i32
    %c0_i32_0 = arith.constant 0 : i32
    return %arg0, %c0_i32 : i32, i32
  }
}

</mosaic_0001>

<llo_original>
// kernel: tpu_custom_call.1
$region0: #{tpu_custom_call.1}
  #allocation0 [shape = 'u32[]', space=smem, size = 0x4, offset = 0x4, fixed_abs, tag = 'smem constant byte address 0x4 - core index']
  #allocation1 [shape = 'u32[144,128]{1,0:T(1,128)}', space=vmem, size = 0x12000, scoped, tag = 'internal scratch']
  #allocation2 [shape = 'f32[1,1]{1,0:T(1,128)S(6)}', space=smem, size = 0x200, scoped, tag = 'scoped memory for tpu_custom_call.1']
  %s0 = inlined_call_operand.hbm [shape: f32[2,8,32], index: 0, kind: input, shape index: {}]
  %s1 = inlined_call_operand.vmem [shape: f32[2,8], index: 1, kind: input, shape index: {}]
  %s2 = inlined_call_operand.vmem [shape: f32[1,1,32], index: 2, kind: input, shape index: {}]
  %s3 = inlined_call_operand.<no memory space> [shape: f32[1,1], index: 3, kind: input, shape index: {}]
  %s4 = inlined_call_operand.hbm [shape: f32[2,32], index: 4, kind: output, shape index: {}]
  %s5 = sld [smem:[#allocation0]]
  $region30: #{tpu_custom_call.1} parent=0
    _
  %s7 = ssub.s32 1, %s5
  %s8 = scalar_select 0, %s7, %s5
  %9 = sst [smem:[#allocation2]] %s3
  $region1: #{tpu_custom_call.1} parent=0
    #allocation3 [shape = 'u8[8192]{0}', space=vmem, size = 0x2000, scoped, tag = 'input window, operand 0, single buffered']
    #allocation4 [shape = 's32[1]{0}', space=sflag, size = 0x4, scoped, tag = 'scoped memory for tpu_custom_call.1']
    #allocation5 [shape = 's32[1]{0}', space=sflag, size = 0x4, scoped, tag = 'scoped memory for tpu_custom_call.1']
    #allocation6 [shape = 'u8[1024]{0}', space=vmem, size = 0x400, scoped, tag = 'output window, operand 0, single buffered']
    %10 = vsyncpa [#allocation4], 0
    %11 = vsyncpa [#allocation5], 0
    // Predicated region
    $region2: #{tpu_custom_call.1} parent=1 // pred_check
      _
    $region3: #{tpu_custom_call.1} parent=1 // pred_check_branch
      %13 = sbr.rel (0) target = $region5
    $region4: #{tpu_custom_call.1} parent=1 // pred_region
      %s15 = ssub.s32 256, 256
      %16 = vsyncadd [#allocation4], %s15
      %s17 = sshll.u32 [#allocation3], 4
      %s18 = int_to_ptr.vmem [resolvable:$true] %s17
      %23 = dma.hbm_to_vmem [thread:$0]  %s0, 256, %s18, [#allocation4], 128, 128, 8
    $region5: #{tpu_custom_call.1} parent=1 // pred_fallthru
      _
    // Predicated region
    $region6: #{tpu_custom_call.1} parent=1 // pred_check
      _
    $region7: #{tpu_custom_call.1} parent=1 // pred_check_branch
      %25 = sbr.rel (0) target = $region9
    $region8: #{tpu_custom_call.1} parent=1 // pred_region
      _
    $region9: #{tpu_custom_call.1} parent=1 // pred_fallthru
      _
    // Predicated region
    $region10: #{tpu_custom_call.1} parent=1 // pred_check
      _
    $region11: #{tpu_custom_call.1} parent=1 // pred_check_branch
      %27 = sbr.rel (0) target = $region13
    $region12: #{tpu_custom_call.1} parent=1 // pred_region
      _
    $region13: #{tpu_custom_call.1} parent=1 // pred_fallthru
      _
    // Predicated region
    $region14: #{tpu_custom_call.1} parent=1 // pred_check
      _
    $region15: #{tpu_custom_call.1} parent=1 // pred_check_branch
      %29 = sbr.rel (0) target = $region17
    $region16: #{tpu_custom_call.1} parent=1 // pred_region
      _
    $region17: #{tpu_custom_call.1} parent=1 // pred_fallthru
      _
    // Predicated region
    $region18: #{tpu_custom_call.1} parent=1 // pred_check
      _
    $region19: #{tpu_custom_call.1} parent=1 // pred_check_branch
      %31 = sbr.rel (0) target = $region21
    $region20: #{tpu_custom_call.1} parent=1 // pred_region
      %32 = dma.done [#allocation4], 256
    $region21: #{tpu_custom_call.1} parent=1 // pred_fallthru
      _
    %s33 = sld [smem:[#allocation2]]
    %v34 = vld [vmem:[#allocation3] sm:$0xff]
    %v35 = vld [vmem:[#allocation3 + $0x8] sm:$0xff]
    %v36 = vld [vmem:[%s2] sm:$0x1]
    %v38 = vlaneseq
    %v39 = vshrl.u32 %v38, 7
    %v40 = vsub.s32 0, %v39
    %v41 = vrot.slane %v36, %v40
    %v43 = vmul.f32 %v34, %v41
    %v44 = vmul.f32 %v35, %v41
    %vm45 = vcmask 261120
    %v46 = vsel %vm45, %v43, 0.0
    %47 = vadd.xlane.f32.xlu0 %v46
    %v48 = vpop.xlane.xlu0 %47
    %v49 = vsel %vm45, %v44, 0.0
    %50 = vadd.xlane.f32.xlu0 %v49
    %v51 = vpop.xlane.xlu0 %50
    %v52 = vstv %s33
    %v53 = vadd.f32 %v48, %v52
    %v54 = vadd.f32 %v51, %v52
    %v55 = vld [vmem:[%s1] sm:$0x3]
    %v57 = vlaneseq
    %v58 = vshrl.u32 %v57, 7
    %v59 = vsub.s32 0, %v58
    %v60 = vrot.slane %v55, %v59
    %62 = vbcast.lane.b32.xlu0 %v60, 256
    %v63 = vpop.permute.xlu0 %62
    %v64 = vlaneseq
    %v65 = vshrl.u32 %v64, 7
    %v66 = vsub.s32 1, %v65
    %v67 = vrot.slane %v55, %v66
    %69 = vbcast.lane.b32.xlu0 %v67, 256
    %v70 = vpop.permute.xlu0 %69
    %v73 = vmul.f32 %v53, %v63
    %v74 = vmul.f32 %v54, %v70
    %77 = vset.pattern.permute.xlu0 0
    %78 = vperm.xlu0 %77, %v73
    %v79 = vpop.permute.xlu0 %78
    %80 = vset.pattern.permute.xlu0 0
    %81 = vperm.xlu0 %80, %v74
    %v82 = vpop.permute.xlu0 %81
    %v83 = vlaneseq
    %v84 = vand.u32 %v83, 127
    %v85 = vlaneseq
    %v86 = vshrl.u32 %v85, 7
    %v87 = vsub.s32 %v84, %v86
    %v88 = vrot.slane %v79, %v87
    %v89 = vlaneseq
    %v90 = vshrl.u32 %v89, 7
    %v91 = vsub.s32 %v84, %v90
    %v92 = vrot.slane %v82, %v91
    %vm93 = vcmask 1041409
    %v94 = vsel %vm93, %v92, %v88
    %vm96 = vcmask 58368
    %v97 = vsel %vm96, %v94, -inf
    %98 = vmax.xlane.f32.xlu0 %v97
    %v99 = vpop.xlane.xlu0 %98
    %v101 = vlaneseq
    %v102 = vshrl.u32 %v101, 7
    %v103 = vsub.s32 0, %v102
    %v104 = vrot.slane %v99, %v103
    %v105 = vlaneseq
    %v106 = vshrl.u32 %v105, 7
    %v107 = vsub.s32 1, %v106
    %v108 = vrot.slane %v99, %v107
    %v111 = vsub.f32 %v73, %v104
    %v112 = vsub.f32 %v74, %v108
    %v113 = vmul.f32 %v111, 1.442695
    %v114 = vpow.pop %v113
    %v115 = vmul.f32 %v112, 1.442695
    %v116 = vpow.pop %v115
    %119 = vset.pattern.permute.xlu0 0
    %120 = vperm.xlu0 %119, %v114
    %v121 = vpop.permute.xlu0 %120
    %122 = vset.pattern.permute.xlu0 0
    %123 = vperm.xlu0 %122, %v116
    %v124 = vpop.permute.xlu0 %123
    %v125 = vlaneseq
    %v126 = vshrl.u32 %v125, 7
    %v127 = vsub.s32 %v84, %v126
    %v128 = vrot.slane %v121, %v127
    %v129 = vlaneseq
    %v130 = vshrl.u32 %v129, 7
    %v131 = vsub.s32 %v84, %v130
    %v132 = vrot.slane %v124, %v131
    %v133 = vsel %vm93, %v132, %v128
    %v135 = vsel %vm96, %v133, 0.0
    %136 = vadd.xlane.f32.xlu0 %v135
    %v137 = vpop.xlane.xlu0 %136
    %v139 = vlaneseq
    %v140 = vshrl.u32 %v139, 7
    %v141 = vsub.s32 0, %v140
    %v142 = vrot.slane %v137, %v141
    %v143 = vlaneseq
    %v144 = vshrl.u32 %v143, 7
    %v145 = vsub.s32 1, %v144
    %v146 = vrot.slane %v137, %v145
    %v149 = vrcp.pop %v142
    %v150 = vmul.f32 %v114, %v149
    %v151 = vrcp.pop %v146
    %v152 = vmul.f32 %v116, %v151
    %155 = vset.pattern.permute.xlu0 0
    %156 = vperm.xlu0 %155, %v150
    %v157 = vpop.permute.xlu0 %156
    %158 = vset.pattern.permute.xlu0 0
    %159 = vperm.xlu0 %158, %v152
    %v160 = vpop.permute.xlu0 %159
    %v161 = vlaneseq
    %v162 = vshrl.u32 %v161, 7
    %v163 = vsub.s32 %v84, %v162
    %v164 = vrot.slane %v157, %v163
    %v165 = vlaneseq
    %v166 = vshrl.u32 %v165, 7
    %v167 = vsub.s32 %v84, %v166
    %v168 = vrot.slane %v160, %v167
    %v169 = vsel %vm93, %v168, %v164
    %v171 = vsel %vm96, %v169, 0.0
    %172 = vadd.xlane.f32.xlu0 %v171
    %v173 = vpop.xlane.xlu0 %172
    %v174 = vadd.f32 %v173, 1e-13
    %v176 = vlaneseq
    %v177 = vshrl.u32 %v176, 7
    %v178 = vsub.s32 0, %v177
    %v179 = vrot.slane %v174, %v178
    %v180 = vlaneseq
    %v181 = vshrl.u32 %v180, 7
    %v182 = vsub.s32 1, %v181
    %v183 = vrot.slane %v174, %v182
    %v186 = vrcp.pop %v179
    %v187 = vmul.f32 %v150, %v186
    %v188 = vrcp.pop %v183
    %v189 = vmul.f32 %v152, %v188
    %191 = vset.pattern.permute.xlu0 0
    %192 = vperm.xlu0 %191, %v187
    %v193 = vpop.permute.xlu0 %192
    %196 = vset.pattern.permute.xlu0 0
    %197 = vperm.xlu0 %196, %v189
    %v198 = vpop.permute.xlu0 %197
    %v200 = vmul.f32 %v193, %v34
    %v201 = vmul.f32 %v198, %v35
    %v202 = vsel %vm45, %v200, 0.0
    %v203 = vrot.slane %v202, 4
    %v204 = vadd.f32 %v202, %v203
    %v205 = vrot.slane %v204, 2
    %v206 = vadd.f32 %v204, %v205
    %v207 = vrot.slane %v206, 1
    %v208 = vadd.f32 %v206, %v207
    %v209 = vsel %vm45, %v201, 0.0
    %v210 = vrot.slane %v209, 4
    %v211 = vadd.f32 %v209, %v210
    %v212 = vrot.slane %v211, 2
    %v213 = vadd.f32 %v211, %v212
    %v214 = vrot.slane %v213, 1
    %v215 = vadd.f32 %v213, %v214
    %v218 = vsel %vm93, %v215, %v208
    %vm220 = vcmask 254976
    %221 = vst.msk [vmem:[#allocation6] sm:$0x3] %vm220, %v218
    // Predicated region
    $region22: #{tpu_custom_call.1} parent=1 // pred_check
      _
    $region23: #{tpu_custom_call.1} parent=1 // pred_check_branch
      %223 = sbr.rel (0) target = $region25
    $region24: #{tpu_custom_call.1} parent=1 // pred_region
      %s225 = ssub.s32 32, 32
      %226 = vsyncadd [#allocation5], %s225
      %s228 = sshll.u32 [#allocation6], 4
      %s229 = int_to_ptr.vmem [resolvable:$true] %s228
      %231 = dma.vmem_to_hbm [thread:$0]  %s229, 32, %s4, [#allocation5]
    $region25: #{tpu_custom_call.1} parent=1 // pred_fallthru
      _
    // Predicated region
    $region26: #{tpu_custom_call.1} parent=1 // pred_check
      _
    $region27: #{tpu_custom_call.1} parent=1 // pred_check_branch
      %233 = sbr.rel (0) target = $region29
    $region28: #{tpu_custom_call.1} parent=1 // pred_region
      %234 = dma.done [#allocation5], 32
    $region29: #{tpu_custom_call.1} parent=1 // pred_fallthru
      _
    %235 = vsyncpa [#allocation4], 1
    %236 = vsyncpa [#allocation5], 1

</llo_original>
